<compile_context>
chip_gen: v5e
topology: v5e:2x2
jax: 0.10.0
libtpu: 0.0.40
codegen_flags: <defaults>
</compile_context>

<pallas_src>
import functools

import jax
import jax.numpy as jnp
from jax.experimental import pallas as pl
from jax.experimental.pallas import tpu as pltpu


def _round_up(a, b):
    return (a + b - 1) // b * b


def _generator_kernel(x_ref, w_ref, o_ref, lse_ref, m_ref, l_ref, *, tv, vocab, v_pad):
    # x_ref:   (tm, H)  bf16 token tile      (revisited across the vocab axis)
    # w_ref:   (tv, H)  bf16 weight tile     ([vocab, hidden] layout, streamed)
    # o_ref:   (tm, tv) f32 raw-logit tile   (streamed: new output block per step)
    # lse_ref: (tm, 1)  f32 log-sum-exp      (revisited; written on the last step)
    # m_ref/l_ref: (tm, 1) f32 running max / rescaled sum-of-exp (VMEM scratch)
    j = pl.program_id(1)
    nj = pl.num_programs(1)

    @pl.when(j == 0)
    def _init():
        m_ref[...] = jnp.full_like(m_ref, -jnp.inf)
        l_ref[...] = jnp.zeros_like(l_ref)

    # Logit tile on the MXU: bf16 operands, f32 accumulation, contracting the
    # hidden axis of both operands (weight stays in nn.Linear [V, H] layout).
    logits = jax.lax.dot_general(
        x_ref[...],
        w_ref[...],
        dimension_numbers=(((1,), (1,)), ((), ())),
        preferred_element_type=jnp.float32,
    )

    # Stream the raw logits straight out.  Padded vocab rows of the weight are
    # zero, so padded columns hold 0.0 (never -inf) and are sliced off later.
    o_ref[...] = logits

    # Online softmax statistics.  Padded columns must not contribute to the
    # normalizer; they only exist on the last vocab tile, so the mask predicate
    # folds in `j == last` and is a pass-through everywhere else.
    red = logits
    if v_pad != vocab:
        col = j * tv + jax.lax.broadcasted_iota(jnp.int32, logits.shape, 1)
        red = jnp.where((j < nj - 1) | (col < vocab), logits, -jnp.inf)

    m_prev = m_ref[...]
    m_new = jnp.maximum(m_prev, jnp.max(red, axis=-1, keepdims=True))
    l_ref[...] = l_ref[...] * jnp.exp(m_prev - m_new) + jnp.sum(
        jnp.exp(red - m_new), axis=-1, keepdims=True
    )
    m_ref[...] = m_new

    @pl.when(j == nj - 1)
    def _finalize():
        lse_ref[...] = m_ref[...] + jnp.log(l_ref[...])


def prepare_generator_weight(weight):
    """Hoistable prep: cast the [vocab, hidden] nn.Linear weight to bf16 and
    zero-pad the vocab dim to a multiple of 128.  Do this ONCE, not per call."""
    vocab = weight.shape[0]
    v_pad = _round_up(vocab, 128)
    w = weight.astype(jnp.bfloat16)
    if v_pad != vocab:
        w = jnp.pad(w, ((0, v_pad - vocab), (0, 0)))
    return w, vocab


def _default_token_tile():
    try:
        kind = jax.devices()[0].device_kind.lower()
    except Exception:
        return 1024
    if "v5 lite" in kind or "v5e" in kind or "v5lite" in kind:
        # v5e: ~197 TF/s vs ~0.82 TB/s -> roughly balanced already at tm~256.
        return 256
    # v6e / v7x need tm ~1024 to keep the streamed weight DMA hidden behind MXU.
    return 1024


def _pick_vocab_tile(v_pad, tv):
    # Largest multiple of 128 <= tv that divides v_pad (v_pad is a mult of 128).
    cand = max(128, min((tv // 128) * 128, v_pad))
    while v_pad % cand:
        cand -= 128
    return cand


_VMEM_LIMIT = 40 * 1024 * 1024   # scoped VMEM limit: safe on v7x (64 MiB / TC)
_VMEM_TARGET = 36 * 1024 * 1024  # keep estimated footprint under this


def _footprint_bytes(tm, tv, hidden):
    # Double-buffered x, w and streamed-output tiles + small lse/scratch.
    return (
        2 * (tm * hidden * 2)     # x tile (bf16)
        + 2 * (tv * hidden * 2)   # weight tile (bf16)
        + 2 * (tm * tv * 4)       # logits tile (f32)
        + 4 * (tm * 4)            # lse output + running max/sum scratches
    )


def generator_forward(x, weight, *, vocab=None, tm=None, tv=512):
    """log_softmax(x @ weight.T, axis=-1)   (== Generator.forward).

    x:      [..., hidden] (any float dtype; cast to bf16 for the MXU).
    weight: either the raw f32 [vocab, hidden] nn.Linear weight, or the
            pre-prepared bf16 padded weight from prepare_generator_weight
            (pass vocab= in that case to avoid a per-call cast/pad).
    """
    orig_shape = x.shape
    hidden = orig_shape[-1]
    if vocab is None:
        vocab = weight.shape[0]
    # No-op when the weight was prepared out-of-line (the fast path).
    if weight.dtype != jnp.bfloat16 or weight.shape[0] % 128 != 0:
        weight = prepare_generator_weight(weight)[0]
    v_pad = weight.shape[0]

    x2d = x.reshape(-1, hidden).astype(jnp.bfloat16)
    m = x2d.shape[0]

    # --- tiling --------------------------------------------------------------
    if tm is None:
        tm = _default_token_tile()
    tv_eff = _pick_vocab_tile(v_pad, tv)
    # Every vocab tile must contain at least one real column (no all-pad tile).
    assert v_pad - vocab < tv_eff, (v_pad, vocab, tv_eff)

    tm_eff = _round_up(min(tm, _round_up(m, 16)), 16)  # bf16 packs (16,128)/vreg
    while _footprint_bytes(tm_eff, tv_eff, hidden) > _VMEM_TARGET and tm_eff > 16:
        tm_eff = max(16, _round_up(tm_eff // 2, 16))
    m_pad = _round_up(m, tm_eff)
    # TODO(synk): for single-token-tile decode on v7x, split the vocab reduction
    # across both TensorCores and merge the partial (max, sumexp) pairs.

    if m_pad != m:
        x2d = jnp.pad(x2d, ((0, m_pad - m), (0, 0)))

    n_tok_tiles = m_pad // tm_eff
    n_voc_tiles = v_pad // tv_eff

    kernel = functools.partial(_generator_kernel, tv=tv_eff, vocab=vocab, v_pad=v_pad)

    cost = pl.CostEstimate(
        flops=2 * m_pad * v_pad * hidden,
        transcendentals=m_pad * v_pad,
        bytes_accessed=(
            m_pad * hidden * 2                    # x (bf16)
            + n_tok_tiles * v_pad * hidden * 2    # weight streamed per token tile
            + m_pad * v_pad * 4                   # streamed logits out (f32)
            + m_pad * 4                           # lse out
        ),
    )

    logits, lse = pl.pallas_call(
        kernel,
        out_shape=(
            jax.ShapeDtypeStruct((m_pad, v_pad), jnp.float32),
            jax.ShapeDtypeStruct((m_pad, 1), jnp.float32),
        ),
        grid_spec=pltpu.PrefetchScalarGridSpec(
            num_scalar_prefetch=0,
            grid=(n_tok_tiles, n_voc_tiles),
            in_specs=[
                pl.BlockSpec((tm_eff, hidden), lambda i, j: (i, 0)),
                pl.BlockSpec((tv_eff, hidden), lambda i, j: (j, 0)),
            ],
            out_specs=[
                pl.BlockSpec((tm_eff, tv_eff), lambda i, j: (i, j)),  # streamed
                pl.BlockSpec((tm_eff, 1), lambda i, j: (i, 0)),       # lse
            ],
            scratch_shapes=[
                pltpu.VMEM((tm_eff, 1), jnp.float32),  # running max
                pltpu.VMEM((tm_eff, 1), jnp.float32),  # running sum of exp
            ],
        ),
        compiler_params=pltpu.CompilerParams(
            # token axis shards across v7x's 2 TCs; vocab reduction stays per-core
            dimension_semantics=("parallel", "arbitrary"),
            vmem_limit_bytes=_VMEM_LIMIT,
        ),
        cost_estimate=cost,
    )(x2d, weight)

    # Epilogue: log-probs = logits - lse.  XLA fuses the broadcast-subtract with
    # the un-padding slice => one read of the padded logits, one final write.
    out = logits[:m, :vocab] - lse[:m]
    return out.reshape(*orig_shape[:-1], vocab)


if __name__ == "__main__":
    # Small shapes chosen so both grid axes have >1 tile and the vocab-padding
    # mask path is exercised: m = 2*24 = 48 tokens (3 token tiles of 16),
    # vocab = 1000 -> v_pad = 1024 (4 vocab tiles of 256).
    batch, seq, hidden, vocab = 2, 24, 128, 1000

    key = jax.random.PRNGKey(0)
    kx, kw = jax.random.split(key)
    x = jax.random.normal(kx, (batch, seq, hidden), dtype=jnp.float32)
    # Deterministic init mimicking nn.Linear's uniform(-1/sqrt(H), 1/sqrt(H)).
    bound = 1.0 / (hidden ** 0.5)
    weight = jax.random.uniform(
        kw, (vocab, hidden), minval=-bound, maxval=bound, dtype=jnp.float32
    )

    # Hoist the weight bf16 cast + vocab pad out of the hot path (done once).
    w_prepped, _ = prepare_generator_weight(weight)

    fwd = jax.jit(functools.partial(generator_forward, vocab=vocab, tm=16, tv=256))
    out = fwd(x, w_prepped)
    jax.block_until_ready(out)

    # Reference: log_softmax(x @ W^T) in plain f32 JAX.
    ref = jax.nn.log_softmax(jnp.einsum("bsh,vh->bsv", x, weight), axis=-1)
    assert out.shape == (batch, seq, vocab)
    # bf16 MXU operands -> loosened tolerance vs. the f32 reference.
    assert jnp.allclose(out, ref, atol=3e-2, rtol=3e-2), (
        float(jnp.max(jnp.abs(out - ref)))
    )

    print("KERNEL_OK")
</pallas_src>

<mosaic_0001>
module attributes {stable_mosaic.version = 11 : i64} {
  func.func @_generator_kernel(%arg0: i32, %arg1: i32, %arg2: memref<16x128xbf16, #tpu.memory_space<vmem>>, %arg3: memref<256x128xbf16, #tpu.memory_space<vmem>>, %arg4: memref<16x256xf32, #tpu.memory_space<vmem>>, %arg5: memref<16x1xf32, #tpu.memory_space<vmem>>, %arg6: memref<16x1xf32, #tpu.memory_space<vmem>>, %arg7: memref<16x1xf32, #tpu.memory_space<vmem>>) attributes {dimension_semantics = [#tpu.dimension_semantics<parallel>, #tpu.dimension_semantics<arbitrary>], iteration_bounds = array<i64: 3, 4>, scalar_prefetch = 0 : i64, scratch_operands = 2 : i64, tpu.core_type = #tpu.core_type<tc>, window_params = [{transform_indices = @transform_0, window_bounds = array<i64: 16, 128>}, {transform_indices = @transform_1, window_bounds = array<i64: 256, 128>}, {transform_indices = @transform_2, window_bounds = array<i64: 16, 256>}, {transform_indices = @transform_3, window_bounds = array<i64: 16, 1>}]} {
    %c0_i32 = arith.constant 0 : i32
    %0 = arith.cmpi eq, %arg1, %c0_i32 : i32
    %1 = arith.extui %0 : i1 to i32
    %c0_i32_0 = arith.constant 0 : i32
    %2 = arith.cmpi ne, %1, %c0_i32_0 : i32
    scf.if %2 {
      %cst_19 = arith.constant 0xFF800000 : f32
      %37 = vector.broadcast %cst_19 : f32 to vector<16x1xf32>
      %c0_20 = arith.constant 0 : index
      %c0_21 = arith.constant 0 : index
      %38 = vector.load %arg6[%c0_20, %c0_21] : memref<16x1xf32, #tpu.memory_space<vmem>>, vector<16x1xf32>
      tpu.vector_store %arg6[%c0_20, %c0_21], %37 {strides = array<i32>} : memref<16x1xf32, #tpu.memory_space<vmem>>, vector<16x1xf32>,
      %cst_22 = arith.constant 0.000000e+00 : f32
      %39 = vector.broadcast %cst_22 : f32 to vector<16x1xf32>
      %c0_23 = arith.constant 0 : index
      %c0_24 = arith.constant 0 : index
      %40 = vector.load %arg7[%c0_23, %c0_24] : memref<16x1xf32, #tpu.memory_space<vmem>>, vector<16x1xf32>
      tpu.vector_store %arg7[%c0_23, %c0_24], %39 {strides = array<i32>} : memref<16x1xf32, #tpu.memory_space<vmem>>, vector<16x1xf32>,
    } else {
    }
    %c0 = arith.constant 0 : index
    %c0_1 = arith.constant 0 : index
    %3 = vector.load %arg2[%c0, %c0_1] : memref<16x128xbf16, #tpu.memory_space<vmem>>, vector<16x128xbf16>
    %c0_2 = arith.constant 0 : index
    %c0_3 = arith.constant 0 : index
    %4 = vector.load %arg3[%c0_2, %c0_3] : memref<256x128xbf16, #tpu.memory_space<vmem>>, vector<256x128xbf16>
    %cst = arith.constant dense<0.000000e+00> : vector<16x256xf32>
    %5 = tpu.matmul %3, %4, %cst {dimension_numbers = #tpu.dot_dimension_numbers<[1], [1], [0], [0], [0, 0, 1, 0], [], []>} : vector<16x128xbf16>, vector<256x128xbf16>, vector<16x256xf32> -> vector<16x256xf32>
    %c0_4 = arith.constant 0 : index
    %c0_5 = arith.constant 0 : index
    %6 = vector.load %arg4[%c0_4, %c0_5] : memref<16x256xf32, #tpu.memory_space<vmem>>, vector<16x256xf32>
    tpu.vector_store %arg4[%c0_4, %c0_5], %5 {strides = array<i32>} : memref<16x256xf32, #tpu.memory_space<vmem>>, vector<16x256xf32>,
    %c256_i32 = arith.constant 256 : i32
    %7 = arith.muli %arg1, %c256_i32 : i32
    %8 = tpu.iota {dimensions = array<i32: 1>} : vector<16x256xi32>
    %9 = vector.broadcast %7 : i32 to vector<16x256xi32>
    %10 = arith.addi %9, %8 : vector<16x256xi32>
    %c3_i32 = arith.constant 3 : i32
    %11 = arith.cmpi slt, %arg1, %c3_i32 : i32
    %c1000_i32 = arith.constant 1000 : i32
    %12 = vector.broadcast %c1000_i32 : i32 to vector<16x256xi32>
    %13 = arith.cmpi slt, %10, %12 : vector<16x256xi32>
    %14 = vector.broadcast %11 : i1 to vector<16x256xi1>
    %15 = arith.ori %14, %13 : vector<16x256xi1>
    %cst_6 = arith.constant 0xFF800000 : f32
    %16 = vector.broadcast %cst_6 : f32 to vector<16x256xf32>
    %17 = arith.select %15, %5, %16 : vector<16x256xi1>, vector<16x256xf32>
    %c0_7 = arith.constant 0 : index
    %c0_8 = arith.constant 0 : index
    %18 = vector.load %arg6[%c0_7, %c0_8] : memref<16x1xf32, #tpu.memory_space<vmem>>, vector<16x1xf32>
    %cst_9 = arith.constant dense<0xFF800000> : vector<16xf32>
    %19 = vector.multi_reduction <maximumf>, %17, %cst_9 [1] : vector<16x256xf32> to vector<16xf32>
    %20 = vector.shape_cast %19 : vector<16xf32> to vector<16x1xf32>
    %21 = arith.maximumf %18, %20 : vector<16x1xf32>
    %c0_10 = arith.constant 0 : index
    %c0_11 = arith.constant 0 : index
    %22 = vector.load %arg7[%c0_10, %c0_11] : memref<16x1xf32, #tpu.memory_space<vmem>>, vector<16x1xf32>
    %23 = arith.subf %18, %21 : vector<16x1xf32>
    %24 = math.exp %23 : vector<16x1xf32>
    %25 = arith.mulf %22, %24 : vector<16x1xf32>
    %26 = vector.broadcast %21 : vector<16x1xf32> to vector<16x256xf32>
    %27 = arith.subf %17, %26 : vector<16x256xf32>
    %28 = math.exp %27 : vector<16x256xf32>
    %cst_12 = arith.constant dense<0.000000e+00> : vector<16xf32>
    %29 = vector.multi_reduction <add>, %28, %cst_12 [1] : vector<16x256xf32> to vector<16xf32>
    %30 = vector.shape_cast %29 : vector<16xf32> to vector<16x1xf32>
    %31 = arith.addf %25, %30 : vector<16x1xf32>
    %c0_13 = arith.constant 0 : index
    %c0_14 = arith.constant 0 : index
    %32 = vector.load %arg7[%c0_13, %c0_14] : memref<16x1xf32, #tpu.memory_space<vmem>>, vector<16x1xf32>
    tpu.vector_store %arg7[%c0_13, %c0_14], %31 {strides = array<i32>} : memref<16x1xf32, #tpu.memory_space<vmem>>, vector<16x1xf32>,
    %c0_15 = arith.constant 0 : index
    %c0_16 = arith.constant 0 : index
    %33 = vector.load %arg6[%c0_15, %c0_16] : memref<16x1xf32, #tpu.memory_space<vmem>>, vector<16x1xf32>
    tpu.vector_store %arg6[%c0_15, %c0_16], %21 {strides = array<i32>} : memref<16x1xf32, #tpu.memory_space<vmem>>, vector<16x1xf32>,
    %c3_i32_17 = arith.constant 3 : i32
    %34 = arith.cmpi eq, %arg1, %c3_i32_17 : i32
    %35 = arith.extui %34 : i1 to i32
    %c0_i32_18 = arith.constant 0 : i32
    %36 = arith.cmpi ne, %35, %c0_i32_18 : i32
    scf.if %36 {
      %c0_19 = arith.constant 0 : index
      %c0_20 = arith.constant 0 : index
      %37 = vector.load %arg6[%c0_19, %c0_20] : memref<16x1xf32, #tpu.memory_space<vmem>>, vector<16x1xf32>
      %c0_21 = arith.constant 0 : index
      %c0_22 = arith.constant 0 : index
      %38 = vector.load %arg7[%c0_21, %c0_22] : memref<16x1xf32, #tpu.memory_space<vmem>>, vector<16x1xf32>
      %39 = math.log %38 : vector<16x1xf32>
      %40 = arith.addf %37, %39 : vector<16x1xf32>
      %c0_23 = arith.constant 0 : index
      %c0_24 = arith.constant 0 : index
      %41 = vector.load %arg5[%c0_23, %c0_24] : memref<16x1xf32, #tpu.memory_space<vmem>>, vector<16x1xf32>
      tpu.vector_store %arg5[%c0_23, %c0_24], %40 {strides = array<i32>} : memref<16x1xf32, #tpu.memory_space<vmem>>, vector<16x1xf32>,
    } else {
    }
    return
  }
  func.func @transform_0(%arg0: i32, %arg1: i32) -> (i32, i32) {
    %c0_i32 = arith.constant 0 : i32
    %c0_i32_0 = arith.constant 0 : i32
    return %arg0, %c0_i32 : i32, i32
  }
  func.func @transform_1(%arg0: i32, %arg1: i32) -> (i32, i32) {
    %c0_i32 = arith.constant 0 : i32
    %c0_i32_0 = arith.constant 0 : i32
    return %arg1, %c0_i32 : i32, i32
  }
  func.func @transform_2(%arg0: i32, %arg1: i32) -> (i32, i32) {
    %c0_i32 = arith.constant 0 : i32
    return %arg0, %arg1 : i32, i32
  }
  func.func @transform_3(%arg0: i32, %arg1: i32) -> (i32, i32) {
    %c0_i32 = arith.constant 0 : i32
    %c0_i32_0 = arith.constant 0 : i32
    return %arg0, %c0_i32 : i32, i32
  }
}

</mosaic_0001>

<llo_original>
// kernel: generator_forward.1
$region0: #{generator_forward.1}
  #allocation0 [shape = 'u32[]', space=smem, size = 0x4, offset = 0x4, fixed_abs, tag = 'smem constant byte address 0x4 - core index']
  #allocation1 [shape = 'u32[72,128]{1,0:T(1,128)}', space=vmem, size = 0x9000, scoped, tag = 'internal scratch']
  #allocation2 [shape = 'f32[16,1]{1,0:T(8,128)}', space=vmem, size = 0x2000, scoped, tag = 'scratch operand']
  #allocation3 [shape = 'f32[16,1]{1,0:T(8,128)}', space=vmem, size = 0x2000, scoped, tag = 'scratch operand']
  %s0 = inlined_call_operand.vmem [shape: bf16[48,128], index: 0, kind: input, shape index: {}]
  %s1 = inlined_call_operand.hbm [shape: bf16[1024,128], index: 1, kind: input, shape index: {}]
  %s2 = inlined_call_operand.vmem [shape: f32[48,1024], index: 2, kind: output, shape index: {0}]
  %s3 = inlined_call_operand.vmem [shape: f32[48,1], index: 3, kind: output, shape index: {1}]
  %4 = xla_tuple %s2, %s3
  %s5 = sld [smem:[#allocation0]]
  $region80: #{generator_forward.1} parent=0
    _
  %s7 = ssub.s32 1, %s5
  %s8 = scalar_select 0, %s7, %s5
  $region1: #{generator_forward.1} parent=0
    #allocation4 [shape = 'u8[131072]{0}', space=vmem, size = 0x20000, scoped, tag = 'input window, operand 1']
    #allocation5 [shape = 's32[2]{0}', space=sflag, size = 0x8, scoped, tag = 'scoped memory for generator_forward.1']
    #allocation6 [shape = 'u8[32768]{0}', space=vmem, size = 0x8000, scoped, tag = 'output window, operand 0']
    %9 = vsyncpa [#allocation5], 0
    %s10 = scalar_lea.sflag [#allocation5], 1
    %11 = vsyncpa %s10, 0
    loop: start=0, step=1, limit=14
    $region2: #{generator_forward.1} parent=1 // loop_pre_header
      _
    $region3: #{generator_forward.1} parent=1 // loop_header
      %s13 = sphi 0, %s17
      %p14 = scmp.ge.s32.totalorder %s13, 14
      %s20 = sphi 0, %s32
      %s21 = sphi 0, %s28
      %s22 = sphi 0, %s20
      %s23 = sphi 0, %s21
      %s24 = sphi 0, %s22
      %s25 = sphi 0, %s23
      %s35 = sphi 0, %s37
      %s38 = sphi 0, %s35
      %s39 = sphi 0, %s38
      %s55 = sphi 0, %s39
      %s61 = sphi 0, %s63
      %s64 = sphi 0, %s61
      %s65 = sphi 0, %s64
      %s81 = sphi 0, %s65
      %s89 = sphi 0, %s91
      %s92 = sphi 0, %s89
      %s93 = sphi 0, %s92
      %s109 = sphi 0, %s93
      %s115 = sphi 0, %s117
      %s118 = sphi 0, %s115
      %s119 = sphi 0, %s118
      %s135 = sphi 0, %s119
    $region4: #{generator_forward.1} parent=1 // loop_header_branch
      %16 = sbr.rel (%p14) target = $region8
    $region5: #{generator_forward.1} parent=1 // loop_body
      %s18 = ssub.s32 %s13, 1
      %s19 = ssub.s32 %s13, 2
      %s26 = sadd.s32 1, %s21
      %p27 = scmp.ge.s32.totalorder %s26, 4
      %s28 = scalar_select %p27, 0, %s26
      %s29 = sadd.s32 1, %s20
      %s30 = scalar_select %p27, %s29, %s20
      %p31 = scmp.ge.s32.totalorder %s30, 3
      %s32 = scalar_select %p31, 0, %s30
      %s33 = ssub.s32 %s20, %s32
      %p34 = scmp.eq.s32.totalorder %s33, 0
      %s36 = sadd.s32 %s35, 1
      %s37 = scalar_select %p34, %s35, %s36
      %p40 = pneg %p34
      %p41 = scmp.eq.s32.totalorder %s13, 11
      %p42 = por %p40, %p41
      %p43 = scmp.ne.s32.totalorder %s35, %s38
      %p44 = scmp.eq.s32.totalorder %s13, 0
      %p45 = por %p43, %p44
      %p46 = scmp.ne.s32.totalorder %s35, %s38
      %p47 = scmp.eq.s32.totalorder %s18, 11
      %p48 = por %p46, %p47
      %p49 = scmp.ne.s32.totalorder %s38, %s39
      %p50 = scmp.eq.s32.totalorder %s18, 0
      %p51 = por %p49, %p50
      %p52 = scmp.ne.s32.totalorder %s38, %s39
      %p53 = scmp.eq.s32.totalorder %s19, 11
      %p54 = por %p52, %p53
      %p56 = scmp.ne.s32.totalorder %s39, %s55
      %p57 = scmp.eq.s32.totalorder %s19, 0
      %p58 = por %p56, %p57
      %s59 = ssub.s32 %s21, %s28
      %p60 = scmp.eq.s32.totalorder %s59, 0
      %s62 = sadd.s32 %s61, 1
      %s63 = scalar_select %p60, %s61, %s62
      %p66 = pneg %p60
      %p67 = scmp.eq.s32.totalorder %s13, 11
      %p68 = por %p66, %p67
      %p69 = scmp.ne.s32.totalorder %s61, %s64
      %p70 = scmp.eq.s32.totalorder %s13, 0
      %p71 = por %p69, %p70
      %p72 = scmp.ne.s32.totalorder %s61, %s64
      %p73 = scmp.eq.s32.totalorder %s18, 11
      %p74 = por %p72, %p73
      %p75 = scmp.ne.s32.totalorder %s64, %s65
      %p76 = scmp.eq.s32.totalorder %s18, 0
      %p77 = por %p75, %p76
      %p78 = scmp.ne.s32.totalorder %s64, %s65
      %p79 = scmp.eq.s32.totalorder %s19, 11
      %p80 = por %p78, %p79
      %p82 = scmp.ne.s32.totalorder %s65, %s81
      %p83 = scmp.eq.s32.totalorder %s19, 0
      %p84 = por %p82, %p83
      %s85 = ssub.s32 %s20, %s32
      %s86 = ssub.s32 %s21, %s28
      %s87 = sor.u32 %s85, %s86
      %p88 = scmp.eq.s32.totalorder %s87, 0
      %s90 = sadd.s32 %s89, 1
      %s91 = scalar_select %p88, %s89, %s90
      %p94 = pneg %p88
      %p95 = scmp.eq.s32.totalorder %s13, 11
      %p96 = por %p94, %p95
      %p97 = scmp.ne.s32.totalorder %s89, %s92
      %p98 = scmp.eq.s32.totalorder %s13, 0
      %p99 = por %p97, %p98
      %p100 = scmp.ne.s32.totalorder %s89, %s92
      %p101 = scmp.eq.s32.totalorder %s18, 11
      %p102 = por %p100, %p101
      %p103 = scmp.ne.s32.totalorder %s92, %s93
      %p104 = scmp.eq.s32.totalorder %s18, 0
      %p105 = por %p103, %p104
      %p106 = scmp.ne.s32.totalorder %s92, %s93
      %p107 = scmp.eq.s32.totalorder %s19, 11
      %p108 = por %p106, %p107
      %p110 = scmp.ne.s32.totalorder %s93, %s109
      %p111 = scmp.eq.s32.totalorder %s19, 0
      %p112 = por %p110, %p111
      %s113 = ssub.s32 %s20, %s32
      %p114 = scmp.eq.s32.totalorder %s113, 0
      %s116 = sadd.s32 %s115, 1
      %s117 = scalar_select %p114, %s115, %s116
      %p120 = pneg %p114
      %p121 = scmp.eq.s32.totalorder %s13, 11
      %p122 = por %p120, %p121
      %p123 = scmp.ne.s32.totalorder %s115, %s118
      %p124 = scmp.eq.s32.totalorder %s13, 0
      %p125 = por %p123, %p124
      %p126 = scmp.ne.s32.totalorder %s115, %s118
      %p127 = scmp.eq.s32.totalorder %s18, 11
      %p128 = por %p126, %p127
      %p129 = scmp.ne.s32.totalorder %s118, %s119
      %p130 = scmp.eq.s32.totalorder %s18, 0
      %p131 = por %p129, %p130
      %p132 = scmp.ne.s32.totalorder %s118, %s119
      %p133 = scmp.eq.s32.totalorder %s19, 11
      %p134 = por %p132, %p133
      %p136 = scmp.ne.s32.totalorder %s119, %s135
      %p137 = scmp.eq.s32.totalorder %s19, 0
      %p138 = por %p136, %p137
      %p139 = scmp.le.s32.totalorder 1, %s13
      %p140 = scmp.lt.s32.totalorder %s13, 13
      %p141 = pnand %p139, %p140
      %p142 = pneg %p141
      // Predicated region
      $region9: #{generator_forward.1} parent=5 // pred_check
        _
      $region10: #{generator_forward.1} parent=5 // pred_check_branch
        %144 = sbr.rel (%p141) target = $region12
      $region11: #{generator_forward.1} parent=5 // pred_region
        %s145 = ssub.s32 %s13, 1
      $region12: #{generator_forward.1} parent=5 // pred_fallthru
        _
      %p146 = scmp.lt.s32.totalorder %s13, 12
      // Predicated region
      $region13: #{generator_forward.1} parent=5 // pred_check
        %p147 = pneg %p146
      $region14: #{generator_forward.1} parent=5 // pred_check_branch
        %149 = sbr.rel (%p147) target = $region16
      $region15: #{generator_forward.1} parent=5 // pred_region
        // Predicated region
        $region17: #{generator_forward.1} parent=15 // pred_check
          %p150 = pneg %p45
        $region18: #{generator_forward.1} parent=15 // pred_check_branch
          %152 = sbr.rel (%p150) target = $region20
        $region19: #{generator_forward.1} parent=15 // pred_region
          %s153 = smul.u32 2, %s20
          %p154 = scmp.lt.s32.totalorder %s153, 5
          %s155 = scalar_select %p154, %s153, 5
          %s156 = smul.addr %s155, 4
          %s157 = scalar_lea.vmem %s0, %s156
          %s158 = smul.u32 2, %s20
        $region20: #{generator_forward.1} parent=15 // pred_fallthru
          _
        // Predicated region
        $region21: #{generator_forward.1} parent=15 // pred_check
          %p159 = pneg %p71
        $region22: #{generator_forward.1} parent=15 // pred_check_branch
          %161 = sbr.rel (%p159) target = $region24
        $region23: #{generator_forward.1} parent=15 // pred_region
          %s162 = sand.u32 %s61, 1
          %s163 = scalar_lea.sflag [#allocation5], %s162
          %s164 = sand.u32 %s61, 1
          %s165 = smul.addr %s164, 128
          %s166 = scalar_lea.vmem [#allocation4], %s165
          %s167 = smul.u32 32, %s21
          %169 = vsyncadd %s163, 0
          %s170 = smul.addr %s167, 4
          %s171 = scalar_lea.hbm %s1, %s170
          %s172 = sshll.u32 %s171, 4
          %s173 = int_to_ptr.hbm [resolvable:$true] %s172
          %s174 = sshll.u32 %s166, 4
          %s175 = int_to_ptr.vmem [resolvable:$true] %s174
          %180 = dma.hbm_to_vmem [thread:$0]  %s173, 2048, %s175, %s163, 64, 64, 4
        $region24: #{generator_forward.1} parent=15 // pred_fallthru
          _
      $region16: #{generator_forward.1} parent=5 // pred_fallthru
        _
      %p181 = scmp.le.s32.totalorder 1, %s13
      %p182 = scmp.lt.s32.totalorder %s13, 13
      %p183 = pnand %p181, %p182
      %p184 = pneg %p183
      // Predicated region
      $region25: #{generator_forward.1} parent=5 // pred_check
        _
      $region26: #{generator_forward.1} parent=5 // pred_check_branch
        %186 = sbr.rel (%p183) target = $region28
      $region27: #{generator_forward.1} parent=5 // pred_region
        %s187 = ssub.s32 %s13, 1
        %s188 = sand.u32 %s64, 1
        %s189 = scalar_lea.sflag [#allocation5], %s188
        %s190 = sand.u32 %s64, 1
        %s191 = smul.addr %s190, 128
        %s192 = scalar_lea.vmem [#allocation4], %s191
        // Predicated region
        $region29: #{generator_forward.1} parent=27 // pred_check
          %p193 = pneg %p77
        $region30: #{generator_forward.1} parent=27 // pred_check_branch
          %195 = sbr.rel (%p193) target = $region32
        $region31: #{generator_forward.1} parent=27 // pred_region
          %197 = dma.done %s189, 2048
        $region32: #{generator_forward.1} parent=27 // pred_fallthru
          _
        %s198 = smul.u32 2, %s22
        %p199 = scmp.lt.s32.totalorder %s198, 5
        %s200 = scalar_select %p199, %s198, 5
        %s201 = smul.addr %s200, 4
        %s202 = scalar_lea.vmem %s0, %s201
        %p203 = pneg %p51
        %p204 = pneg %p48
        %s205 = sand.u32 %s64, 1
        %s206 = scalar_lea.sflag [#allocation5], %s205
        %s207 = sand.u32 %s64, 1
        %s208 = smul.addr %s207, 128
        %s209 = scalar_lea.vmem [#allocation4], %s208
        %p210 = pneg %p77
        %p211 = pneg %p74
        %p212 = pneg %p105
        %p213 = pneg %p102
        %s214 = sand.u32 %s92, 1
        %s215 = sand.u32 %s92, 1
        %s216 = smul.addr %s215, 32
        %s217 = scalar_lea.vmem [#allocation6], %s216
        %p218 = pneg %p131
        %p219 = pneg %p128
        %s220 = smul.u32 2, %s22
        %p221 = scmp.lt.s32.totalorder %s220, 5
        %s222 = scalar_select %p221, %s220, 5
        %s223 = smul.addr %s222, 8
        %s224 = scalar_lea.vmem %s3, %s223
        %s225 = smul.u32 2, %s22
        %p226 = scmp.lt.s32.totalorder %s225, 5
        %s227 = scalar_select %p226, %s225, 5
        %s228 = smul.addr %s227, 4
        %s229 = scalar_lea.vmem %s0, %s228
        %s230 = smul.u32 2, %s22
        %s231 = smul.u32 32, %s23
        %s232 = smul.u32 2, %s22
        %s233 = smul.u32 2, %s23
        %s234 = smul.u32 2, %s22
        %p235 = scmp.lt.s32.totalorder %s234, 5
        %s236 = scalar_select %p235, %s234, 5
        %s237 = smul.addr %s236, 8
        %s238 = scalar_lea.vmem %s3, %s237
        %s239 = smul.u32 2, %s22
        %p240 = scmp.eq.s32.totalorder %s23, 0
        // Predicated region
        $region33: #{generator_forward.1} parent=27 // pred_check
          %p241 = pneg %p240
        $region34: #{generator_forward.1} parent=27 // pred_check_branch
          %243 = sbr.rel (%p241) target = $region36
        $region35: #{generator_forward.1} parent=27 // pred_region
          %vm244 = vcmask 7168
          %245 = vst.msk [vmem:[#allocation2] sm:$0xff] %vm244, -inf
          %246 = vst.msk [vmem:[#allocation2 + $0x8] sm:$0xff] %vm244, -inf
          %247 = vst.msk [vmem:[#allocation3] sm:$0xff] %vm244, 0.0
          %248 = vst.msk [vmem:[#allocation3 + $0x8] sm:$0xff] %vm244, 0.0
        $region36: #{generator_forward.1} parent=27 // pred_fallthru
          _
        %v249 = vld [vmem:[%s229] sm:$0xf]
        %v250 = vld [vmem:[%s229 + $0x4] sm:$0xf]
        %v251 = vld [vmem:[%s192] sm:$0xf]
        %v252 = vld [vmem:[%s192 + $0x4] sm:$0xf]
        %v253 = vld [vmem:[%s192 + $0x8] sm:$0xf]
        %v254 = vld [vmem:[%s192 + $0xc] sm:$0xf]
        %v255 = vld [vmem:[%s192 + $0x10] sm:$0xf]
        %v256 = vld [vmem:[%s192 + $0x14] sm:$0xf]
        %v257 = vld [vmem:[%s192 + $0x18] sm:$0xf]
        %v258 = vld [vmem:[%s192 + $0x1c] sm:$0xf]
        %v259 = vld [vmem:[%s192 + $0x20] sm:$0xf]
        %v260 = vld [vmem:[%s192 + $0x24] sm:$0xf]
        %v261 = vld [vmem:[%s192 + $0x28] sm:$0xf]
        %v262 = vld [vmem:[%s192 + $0x2c] sm:$0xf]
        %v263 = vld [vmem:[%s192 + $0x30] sm:$0xf]
        %v264 = vld [vmem:[%s192 + $0x34] sm:$0xf]
        %v265 = vld [vmem:[%s192 + $0x38] sm:$0xf]
        %v266 = vld [vmem:[%s192 + $0x3c] sm:$0xf]
        %v267 = vld [vmem:[%s192 + $0x40] sm:$0xf]
        %v268 = vld [vmem:[%s192 + $0x44] sm:$0xf]
        %v269 = vld [vmem:[%s192 + $0x48] sm:$0xf]
        %v270 = vld [vmem:[%s192 + $0x4c] sm:$0xf]
        %v271 = vld [vmem:[%s192 + $0x50] sm:$0xf]
        %v272 = vld [vmem:[%s192 + $0x54] sm:$0xf]
        %v273 = vld [vmem:[%s192 + $0x58] sm:$0xf]
        %v274 = vld [vmem:[%s192 + $0x5c] sm:$0xf]
        %v275 = vld [vmem:[%s192 + $0x60] sm:$0xf]
        %v276 = vld [vmem:[%s192 + $0x64] sm:$0xf]
        %v277 = vld [vmem:[%s192 + $0x68] sm:$0xf]
        %v278 = vld [vmem:[%s192 + $0x6c] sm:$0xf]
        %v279 = vld [vmem:[%s192 + $0x70] sm:$0xf]
        %v280 = vld [vmem:[%s192 + $0x74] sm:$0xf]
        %v281 = vld [vmem:[%s192 + $0x78] sm:$0xf]
        %v282 = vld [vmem:[%s192 + $0x7c] sm:$0xf]
        %v285 = vunpack.c.l.b16 %v249
        %v286 = vunpack.c.l.b16 %v250
        %v287 = vpack.c.b16 %v286, %v285
        %v321 = vunpack.c.l.b16 %v251
        %v322 = vunpack.c.l.b16 %v252
        %v323 = vunpack.c.l.b16 %v253
        %v324 = vunpack.c.l.b16 %v254
        %v325 = vunpack.c.l.b16 %v255
        %v326 = vunpack.c.l.b16 %v256
        %v327 = vunpack.c.l.b16 %v257
        %v328 = vunpack.c.l.b16 %v258
        %v329 = vunpack.c.l.b16 %v259
        %v330 = vunpack.c.l.b16 %v260
        %v331 = vunpack.c.l.b16 %v261
        %v332 = vunpack.c.l.b16 %v262
        %v333 = vunpack.c.l.b16 %v263
        %v334 = vunpack.c.l.b16 %v264
        %v335 = vunpack.c.l.b16 %v265
        %v336 = vunpack.c.l.b16 %v266
        %v337 = vunpack.c.l.b16 %v267
        %v338 = vunpack.c.l.b16 %v268
        %v339 = vunpack.c.l.b16 %v269
        %v340 = vunpack.c.l.b16 %v270
        %v341 = vunpack.c.l.b16 %v271
        %v342 = vunpack.c.l.b16 %v272
        %v343 = vunpack.c.l.b16 %v273
        %v344 = vunpack.c.l.b16 %v274
        %v345 = vunpack.c.l.b16 %v275
        %v346 = vunpack.c.l.b16 %v276
        %v347 = vunpack.c.l.b16 %v277
        %v348 = vunpack.c.l.b16 %v278
        %v349 = vunpack.c.l.b16 %v279
        %v350 = vunpack.c.l.b16 %v280
        %v351 = vunpack.c.l.b16 %v281
        %v352 = vunpack.c.l.b16 %v282
        %v353 = vpack.c.b16 %v322, %v321
        %v354 = vpack.c.b16 %v324, %v323
        %v355 = vpack.c.b16 %v326, %v325
        %v356 = vpack.c.b16 %v328, %v327
        %v357 = vpack.c.b16 %v330, %v329
        %v358 = vpack.c.b16 %v332, %v331
        %v359 = vpack.c.b16 %v334, %v333
        %v360 = vpack.c.b16 %v336, %v335
        %v361 = vpack.c.b16 %v338, %v337
        %v362 = vpack.c.b16 %v340, %v339
        %v363 = vpack.c.b16 %v342, %v341
        %v364 = vpack.c.b16 %v344, %v343
        %v365 = vpack.c.b16 %v346, %v345
        %v366 = vpack.c.b16 %v348, %v347
        %v367 = vpack.c.b16 %v350, %v349
        %v368 = vpack.c.b16 %v352, %v351
        %385 = vmatpush.bf16.xpose.msra.mxu0 %v360
        %386 = vmatpush.bf16.xpose.msra.mxu0 %v359
        %387 = vmatpush.bf16.xpose.msra.mxu0 %v358
        %388 = vmatpush.bf16.xpose.msra.mxu0 %v357
        %389 = vmatpush.bf16.xpose.msra.mxu0 %v356
        %390 = vmatpush.bf16.xpose.msra.mxu0 %v355
        %391 = vmatpush.bf16.xpose.msra.mxu0 %v354
        %392 = vmatpush.bf16.xpose.msra.mxu0 %v353
        %393 = vmatmul.bf16.gmra.mxu0 %v287
        %v394 = vpop.f32.mrf.mxu0
        %v395 = vadd.f32 0.0, %v394
        %v396 = vpop.f32.mrf.mxu0
        %v397 = vadd.f32 0.0, %v396
        %398 = vdwg.mxu0
        %399 = vmatpush.bf16.xpose.msra.mxu0 %v368
        %400 = vmatpush.bf16.xpose.msra.mxu0 %v367
        %401 = vmatpush.bf16.xpose.msra.mxu0 %v366
        %402 = vmatpush.bf16.xpose.msra.mxu0 %v365
        %403 = vmatpush.bf16.xpose.msra.mxu0 %v364
        %404 = vmatpush.bf16.xpose.msra.mxu0 %v363
        %405 = vmatpush.bf16.xpose.msra.mxu0 %v362
        %406 = vmatpush.bf16.xpose.msra.mxu0 %v361
        %407 = vmatmul.bf16.gmra.mxu0 %v287
        %v408 = vpop.f32.mrf.mxu0
        %v409 = vadd.f32 0.0, %v408
        %v410 = vpop.f32.mrf.mxu0
        %v411 = vadd.f32 0.0, %v410
        %412 = vdwg.mxu0
        %413 = vst [vmem:[%s217] sm:$0xff] %v395
        %414 = vst [vmem:[%s217 + $0x8] sm:$0xff] %v409
        %415 = vst [vmem:[%s217 + $0x10] sm:$0xff] %v397
        %416 = vst [vmem:[%s217 + $0x18] sm:$0xff] %v411
        %s417 = smul.u32 %s23, 256
        %v418 = vlaneseq
        %v419 = vand.u32 %v418, 127
        %v420 = vadd.s32 %v419, 128
        %v421 = vstv %s417
        %v422 = vadd.s32 %v421, %v419
        %v423 = vadd.s32 %v421, %v420
        %p424 = scmp.lt.s32.totalorder %s23, 3
        %vm425 = vcmp.lt.s32.totalorder %v422, 1000
        %vm426 = vcmp.lt.s32.totalorder %v423, 1000
        %s427 = scalar_select %p424, 1, 0
        %v428 = vstv %s427
        %vm429 = vcmp.eq.s32.totalorder %v428, 1
        %vm430 = vmor %vm429, %vm425
        %vm431 = vmor %vm429, %vm426
        %v432 = vsel %vm430, %v395, -inf
        %v433 = vsel %vm431, %v409, -inf
        %v434 = vsel %vm430, %v397, -inf
        %v435 = vsel %vm431, %v411, -inf
        %v436 = vld [vmem:[#allocation2] sm:$0xff]
        %v437 = vld [vmem:[#allocation2 + $0x8] sm:$0xff]
        %v438 = vmax.f32 %v432, %v433
        %439 = vmax.xlane.f32.xlu0 %v438
        %v440 = vpop.xlane.xlu0 %439
        %v441 = vmax.f32 %v434, %v435
        %442 = vmax.xlane.f32.xlu0 %v441
        %v443 = vpop.xlane.xlu0 %442
        %v444 = vmax.f32 %v436, %v440
        %v445 = vmax.f32 %v437, %v443
        %v446 = vld [vmem:[#allocation3] sm:$0xff]
        %v447 = vld [vmem:[#allocation3 + $0x8] sm:$0xff]
        %v448 = vsub.f32 %v436, %v444
        %v449 = vsub.f32 %v437, %v445
        %v450 = vmul.f32 %v448, 1.442695
        %v451 = vpow.pop %v450
        %v452 = vmul.f32 %v449, 1.442695
        %v453 = vpow.pop %v452
        %v454 = vmul.f32 %v446, %v451
        %v455 = vmul.f32 %v447, %v453
        %457 = vset.pattern.permute.xlu0 0
        %458 = vperm.xlu0 %457, %v444
        %v459 = vpop.permute.xlu0 %458
        %462 = vset.pattern.permute.xlu0 0
        %463 = vperm.xlu0 %462, %v445
        %v464 = vpop.permute.xlu0 %463
        %v466 = vsub.f32 %v432, %v459
        %v467 = vsub.f32 %v433, %v459
        %v468 = vsub.f32 %v434, %v464
        %v469 = vsub.f32 %v435, %v464
        %v470 = vmul.f32 %v466, 1.442695
        %v471 = vpow.pop %v470
        %v472 = vmul.f32 %v467, 1.442695
        %v473 = vpow.pop %v472
        %v474 = vmul.f32 %v468, 1.442695
        %v475 = vpow.pop %v474
        %v476 = vmul.f32 %v469, 1.442695
        %v477 = vpow.pop %v476
        %v478 = vadd.f32 %v471, %v473
        %479 = vadd.xlane.f32.xlu0 %v478
        %v480 = vpop.xlane.xlu0 %479
        %v481 = vadd.f32 %v475, %v477
        %482 = vadd.xlane.f32.xlu0 %v481
        %v483 = vpop.xlane.xlu0 %482
        %v484 = vadd.f32 %v454, %v480
        %v485 = vadd.f32 %v455, %v483
        %vm486 = vcmask 7168
        %487 = vst.msk [vmem:[#allocation3] sm:$0xff] %vm486, %v484
        %488 = vst.msk [vmem:[#allocation3 + $0x8] sm:$0xff] %vm486, %v485
        %489 = vst.msk [vmem:[#allocation2] sm:$0xff] %vm486, %v444
        %490 = vst.msk [vmem:[#allocation2 + $0x8] sm:$0xff] %vm486, %v445
        %p491 = scmp.eq.s32.totalorder %s23, 3
        // Predicated region
        $region37: #{generator_forward.1} parent=27 // pred_check
          %p492 = pneg %p491
        $region38: #{generator_forward.1} parent=27 // pred_check_branch
          %494 = sbr.rel (%p492) target = $region40
        $region39: #{generator_forward.1} parent=27 // pred_region
          %v495 = vld [vmem:[#allocation2] sm:$0xff]
          %v496 = vld [vmem:[#allocation2 + $0x8] sm:$0xff]
          %v497 = vld [vmem:[#allocation3] sm:$0xff]
          %v498 = vld [vmem:[#allocation3 + $0x8] sm:$0xff]
          %v499 = vlog2.pop %v497
          %v500 = vmul.f32 %v499, 0.6931472
          %v501 = vlog2.pop %v498
          %v502 = vmul.f32 %v501, 0.6931472
          %v503 = vadd.f32 %v495, %v500
          %v504 = vadd.f32 %v496, %v502
          %505 = vst.msk [vmem:[%s238] sm:$0xff] %vm486, %v503
          %506 = vst.msk [vmem:[%s238 + $0x8] sm:$0xff] %vm486, %v504
        $region40: #{generator_forward.1} parent=27 // pred_fallthru
          _
        %s507 = sand.u32 %s92, 1
        %s508 = sand.u32 %s92, 1
        %s509 = smul.addr %s508, 32
        %s510 = scalar_lea.vmem [#allocation6], %s509
        %s511 = smul.u32 2, %s22
        %p512 = scmp.lt.s32.totalorder %s511, 5
        %s513 = scalar_select %p512, %s511, 5
        %s514 = smul.addr %s513, 8
        %s515 = scalar_lea.vmem %s3, %s514
        // Predicated region
        $region41: #{generator_forward.1} parent=27 // pred_check
          %p516 = pneg %p102
        $region42: #{generator_forward.1} parent=27 // pred_check_branch
          %518 = sbr.rel (%p516) target = $region44
        $region43: #{generator_forward.1} parent=27 // pred_region
          %s519 = smul.u32 2, %s22
          %s520 = smul.u32 2, %s23
          %s521 = smul.addr %s519, 8
          %s522 = sadd.s32 %s520, %s521
          %s523 = smul.addr %s522, 8
          %s524 = scalar_lea.vmem %s2, %s523
          // Predicated region
          $region45: #{generator_forward.1} parent=43 // pred_check
            _
          $region46: #{generator_forward.1} parent=43 // pred_check_branch
            %526 = sbr.rel (0) target = $region48
          $region47: #{generator_forward.1} parent=43 // pred_region
            // Predicated region
            $region49: #{generator_forward.1} parent=47 // pred_check
              _
            $region50: #{generator_forward.1} parent=47 // pred_check_branch
              %528 = sbr.rel (0) target = $region52
            $region51: #{generator_forward.1} parent=47 // pred_region
              loop: start=0, step=1, limit=1
              $region53: #{generator_forward.1} parent=51 // loop_pre_header
                _
              $region54: #{generator_forward.1} parent=51 // loop_header
                %s530 = sphi 0, %s534
                %p531 = scmp.ge.s32.totalorder %s530, 1
                %s535 = sphi %s510, %s510
                %s536 = sphi %s524, %s524
              $region55: #{generator_forward.1} parent=51 // loop_header_branch
                %533 = sbr.rel (%p531) target = $region59
              $region56: #{generator_forward.1} parent=51 // loop_body
                %v537 = vld [vmem:[%s535] sm:$0xff]
                %538 = vst [vmem:[%s536] sm:$0xff] %v537
                %v539 = vld [vmem:[%s535 + $0x8] sm:$0xff]
                %540 = vst [vmem:[%s536 + $0x8] sm:$0xff] %v539
                %v541 = vld [vmem:[%s535 + $0x10] sm:$0xff]
                %542 = vst [vmem:[%s536 + $0x40] sm:$0xff] %v541
                %v543 = vld [vmem:[%s535 + $0x18] sm:$0xff]
                %544 = vst [vmem:[%s536 + $0x48] sm:$0xff] %v543
              $region57: #{generator_forward.1} parent=51 // loop_footer
                %s534 = sadd.s32 1, %s530
              $region58: #{generator_forward.1} parent=51 // loop_footer_branch
                %529 = sbr.rel target = $region54
              $region59: #{generator_forward.1} parent=51 // loop_exit
                _
            $region52: #{generator_forward.1} parent=47 // pred_fallthru
              _
            // Predicated region
            $region60: #{generator_forward.1} parent=47 // pred_check
              _
            $region61: #{generator_forward.1} parent=47 // pred_check_branch
              %546 = sbr.rel target = $region63
            $region62: #{generator_forward.1} parent=47 // pred_region
              _
            $region63: #{generator_forward.1} parent=47 // pred_fallthru
              _
          $region48: #{generator_forward.1} parent=43 // pred_fallthru
            _
          %547 = vnop
        $region44: #{generator_forward.1} parent=27 // pred_fallthru
          _
        // Predicated region
        $region64: #{generator_forward.1} parent=27 // pred_check
          %p548 = pneg %p128
        $region65: #{generator_forward.1} parent=27 // pred_check_branch
          %550 = sbr.rel (%p548) target = $region67
        $region66: #{generator_forward.1} parent=27 // pred_region
          %s551 = smul.u32 2, %s22
        $region67: #{generator_forward.1} parent=27 // pred_fallthru
          _
      $region28: #{generator_forward.1} parent=5 // pred_fallthru
        _
      %p552 = scmp.le.s32.totalorder 2, %s13
      // Predicated region
      $region68: #{generator_forward.1} parent=5 // pred_check
        %p553 = pneg %p552
      $region69: #{generator_forward.1} parent=5 // pred_check_branch
        %555 = sbr.rel (%p553) target = $region71
      $region70: #{generator_forward.1} parent=5 // pred_region
        %s556 = ssub.s32 %s13, 2
        // Predicated region
        $region72: #{generator_forward.1} parent=70 // pred_check
          %p557 = pneg %p108
        $region73: #{generator_forward.1} parent=70 // pred_check_branch
          %559 = sbr.rel (%p557) target = $region75
        $region74: #{generator_forward.1} parent=70 // pred_region
          %s560 = sand.u32 %s93, 1
          %s561 = sand.u32 %s93, 1
          %s562 = smul.addr %s561, 32
          %s563 = scalar_lea.vmem [#allocation6], %s562
        $region75: #{generator_forward.1} parent=70 // pred_fallthru
          _
        // Predicated region
        $region76: #{generator_forward.1} parent=70 // pred_check
          %p564 = pneg %p134
        $region77: #{generator_forward.1} parent=70 // pred_check_branch
          %566 = sbr.rel (%p564) target = $region79
        $region78: #{generator_forward.1} parent=70 // pred_region
          %s567 = smul.u32 2, %s24
          %p568 = scmp.lt.s32.totalorder %s567, 5
          %s569 = scalar_select %p568, %s567, 5
          %s570 = smul.addr %s569, 8
          %s571 = scalar_lea.vmem %s3, %s570
        $region79: #{generator_forward.1} parent=70 // pred_fallthru
          _
      $region71: #{generator_forward.1} parent=5 // pred_fallthru
        _
    $region6: #{generator_forward.1} parent=1 // loop_footer
      %s17 = sadd.s32 1, %s13
    $region7: #{generator_forward.1} parent=1 // loop_footer_branch
      %12 = sbr.rel target = $region3
    $region8: #{generator_forward.1} parent=1 // loop_exit
      _
    %572 = vsyncpa [#allocation5], 1
    %s573 = scalar_lea.sflag [#allocation5], 1
    %574 = vsyncpa %s573, 1

</llo_original>
